<compile_context>
chip_gen: v6e
topology: v6e:2x2x1
jax: 0.10.0
libtpu: 0.0.40
codegen_flags: <defaults>
</compile_context>

<pallas_src>
import jax
import jax.numpy as jnp
from jax import lax
from jax.experimental import pallas as pl
from jax.experimental.pallas import tpu as pltpu


def _fused_kernel(wc_ref, bc_ref, xt_ref, out_ref):
    """One lane-dense S-tile of the fully folded Linear -> permute(1,2,0) -> Linear.

    out[r, s] = sum_c wc[r, c] * xt[c, s] + bc[r]

    Block shapes:
      wc_ref : (R, C)   combined weight, R = O1*O2 = 4, C = B*K = 9   (resident)
      bc_ref : (R, 1)   combined bias                                 (resident)
      xt_ref : (C, tS)  x transposed so S sits on the 128-lane axis
      out_ref: (R, tS)  lane-dense output slab
    """
    wc = wc_ref[...]                                   # tiny (4, 9) f32 tile
    acc = jnp.zeros(out_ref.shape, jnp.float32)
    # C = B*K = 9 is an architectural constant -> fully unrolled exact-f32 VPU FMAs.
    for c in range(wc_ref.shape[1]):
        acc = acc + wc[:, c:c + 1] * xt_ref[c:c + 1, :]
    out_ref[...] = (acc + bc_ref[...]).astype(out_ref.dtype)   # fold +bc into the store


def fused_model_forward(x, w1, b1, w2, b2, *, ts_max=2048):
    """x: (B, S, K); w1: (O1, K); b1: (O1,); w2: (O2, B); b2: (O2,). Returns (S, O1, O2)."""
    B, S, K = x.shape
    O1, Kw = w1.shape
    O2, Bw = w2.shape
    assert Kw == K, "linear.in_features mismatch"
    assert Bw == B, "linear_2.in_features must equal x.shape[0] (permute(1,2,0) semantics)"

    R, C = O1 * O2, B * K

    # One-time folded weight/bias (36 + 4 floats, fixed by the module architecture):
    #   wc[o*O2+p, b*K+k] = w1[o,k] * w2[p,b]
    #   bc[o*O2+p]        = b1[o] * sum_b w2[p,b] + b2[p]
    wc = jnp.einsum("ok,pb->opbk", w1, w2).reshape(R, C).astype(jnp.float32)
    bc = (b1[:, None] * jnp.sum(w2, axis=1)[None, :] + b2[None, :]).reshape(R, 1)
    bc = bc.astype(jnp.float32)

    # Lane-dense layout: S becomes the 128-lane axis.  xt[b*K + k, s] = x[b, s, k].
    xt = jnp.transpose(x, (0, 2, 1)).reshape(C, S)

    # Tile the only growable dim (S).  Single full tile at toy size; 2048-lane tiles at
    # scale (cdiv + zero padding handles S not divisible by the tile size).
    if S <= ts_max:
        tS, Sp = S, S
    else:
        tS = ts_max
        Sp = pl.cdiv(S, tS) * tS
        if Sp != S:
            xt = jnp.pad(xt, ((0, 0), (0, Sp - S)))

    grid = (Sp // tS,)
    out_t = pl.pallas_call(
        _fused_kernel,
        out_shape=jax.ShapeDtypeStruct((R, Sp), jnp.float32),
        grid=grid,
        in_specs=[
            pl.BlockSpec((R, C), lambda i: (0, 0)),      # wc resident (4 x 9)
            pl.BlockSpec((R, 1), lambda i: (0, 0)),      # bc resident (4 x 1)
            pl.BlockSpec((C, tS), lambda i: (0, i)),     # x_t: tile the lane axis only
        ],
        out_specs=pl.BlockSpec((R, tS), lambda i: (0, i)),
        compiler_params=pltpu.CompilerParams(dimension_semantics=("parallel",)),
    )(wc, bc, xt)

    # (O1*O2, S) -> (S, O1, O2): drop padding, free row-major reshape + one tiny wrapper
    # transpose (layout plumbing, outside the kernel).
    return jnp.transpose(out_t[:, :S].reshape(O1, O2, S), (2, 0, 1))


def reference_forward(x, w1, b1, w2, b2):
    hi = lax.Precision.HIGHEST
    v1 = jnp.einsum("bsk,ok->bso", x, w1, precision=hi) + b1   # F.linear(x1, linear.weight, linear.bias)
    v2 = jnp.transpose(v1, (1, 2, 0))                          # permute(1, 2, 0)
    return jnp.einsum("sob,pb->sop", v2, w2, precision=hi) + b2  # linear_2(v2)


if __name__ == "__main__":
    key = jax.random.PRNGKey(0)
    kx, k1w, k1b, k2w, k2b = jax.random.split(key, 5)

    B, S, K = 3, 8, 3        # B must equal linear_2.in_features == 3
    O1, O2 = 2, 2

    x = jax.random.normal(kx, (B, S, K), dtype=jnp.float32)
    bound1 = 1.0 / (K ** 0.5)
    w1 = jax.random.uniform(k1w, (O1, K), jnp.float32, -bound1, bound1)   # linear.weight
    b1 = jax.random.uniform(k1b, (O1,), jnp.float32, -bound1, bound1)     # linear.bias
    bound2 = 1.0 / (B ** 0.5)
    w2 = jax.random.uniform(k2w, (O2, B), jnp.float32, -bound2, bound2)   # linear_2.weight
    b2 = jax.random.uniform(k2b, (O2,), jnp.float32, -bound2, bound2)     # linear_2.bias

    out = jax.block_until_ready(fused_model_forward(x, w1, b1, w2, b2))
    ref = reference_forward(x, w1, b1, w2, b2)

    assert out.shape == (S, O1, O2)
    # Kernel contraction is exact f32 (VPU FMAs); reference uses HIGHEST precision -> tight check.
    assert jnp.allclose(out, ref, atol=1e-4, rtol=1e-4), "mismatch vs reference"
    print("KERNEL_OK")
</pallas_src>

<mosaic_0001>
module attributes {stable_mosaic.version = 11 : i64} {
  func.func @_fused_kernel(%arg0: i32, %arg1: memref<4x9xf32, #tpu.memory_space<vmem>>, %arg2: memref<4x1xf32, #tpu.memory_space<vmem>>, %arg3: memref<9x8xf32, #tpu.memory_space<vmem>>, %arg4: memref<4x8xf32, #tpu.memory_space<vmem>>) attributes {dimension_semantics = [#tpu.dimension_semantics<parallel>], iteration_bounds = array<i64: 1>, scalar_prefetch = 0 : i64, scratch_operands = 0 : i64, tpu.core_type = #tpu.core_type<tc>, window_params = [{pipeline_mode = #tpu.pipeline_mode<synchronous>, transform_indices = @transform_0, window_bounds = array<i64: 4, 9>}, {pipeline_mode = #tpu.pipeline_mode<synchronous>, transform_indices = @transform_1, window_bounds = array<i64: 4, 1>}, {transform_indices = @transform_2, window_bounds = array<i64: 9, 8>}, {transform_indices = @transform_3, window_bounds = array<i64: 4, 8>}]} {
    %c0 = arith.constant 0 : index
    %c0_0 = arith.constant 0 : index
    %0 = vector.load %arg1[%c0, %c0_0] : memref<4x9xf32, #tpu.memory_space<vmem>>, vector<4x9xf32>
    %cst = arith.constant 0.000000e+00 : f32
    %1 = vector.broadcast %cst : f32 to vector<4x8xf32>
    %2 = vector.extract_strided_slice %0 {offsets = [0, 0], sizes = [4, 1], strides = [1, 1]} : vector<4x9xf32> to vector<4x1xf32>
    %c0_1 = arith.constant 0 : index
    %c0_2 = arith.constant 0 : index
    %3 = vector.load %arg3[%c0_1, %c0_2] : memref<9x8xf32, #tpu.memory_space<vmem>>, vector<1x8xf32>
    %4 = vector.broadcast %2 : vector<4x1xf32> to vector<4x8xf32>
    %5 = vector.broadcast %3 : vector<1x8xf32> to vector<4x8xf32>
    %6 = arith.mulf %4, %5 : vector<4x8xf32>
    %7 = arith.addf %1, %6 : vector<4x8xf32>
    %8 = vector.extract_strided_slice %0 {offsets = [0, 1], sizes = [4, 1], strides = [1, 1]} : vector<4x9xf32> to vector<4x1xf32>
    %c1 = arith.constant 1 : index
    %c0_3 = arith.constant 0 : index
    %9 = vector.load %arg3[%c1, %c0_3] : memref<9x8xf32, #tpu.memory_space<vmem>>, vector<1x8xf32>
    %10 = vector.broadcast %8 : vector<4x1xf32> to vector<4x8xf32>
    %11 = vector.broadcast %9 : vector<1x8xf32> to vector<4x8xf32>
    %12 = arith.mulf %10, %11 : vector<4x8xf32>
    %13 = arith.addf %7, %12 : vector<4x8xf32>
    %14 = vector.extract_strided_slice %0 {offsets = [0, 2], sizes = [4, 1], strides = [1, 1]} : vector<4x9xf32> to vector<4x1xf32>
    %c2 = arith.constant 2 : index
    %c0_4 = arith.constant 0 : index
    %15 = vector.load %arg3[%c2, %c0_4] : memref<9x8xf32, #tpu.memory_space<vmem>>, vector<1x8xf32>
    %16 = vector.broadcast %14 : vector<4x1xf32> to vector<4x8xf32>
    %17 = vector.broadcast %15 : vector<1x8xf32> to vector<4x8xf32>
    %18 = arith.mulf %16, %17 : vector<4x8xf32>
    %19 = arith.addf %13, %18 : vector<4x8xf32>
    %20 = vector.extract_strided_slice %0 {offsets = [0, 3], sizes = [4, 1], strides = [1, 1]} : vector<4x9xf32> to vector<4x1xf32>
    %c3 = arith.constant 3 : index
    %c0_5 = arith.constant 0 : index
    %21 = vector.load %arg3[%c3, %c0_5] : memref<9x8xf32, #tpu.memory_space<vmem>>, vector<1x8xf32>
    %22 = vector.broadcast %20 : vector<4x1xf32> to vector<4x8xf32>
    %23 = vector.broadcast %21 : vector<1x8xf32> to vector<4x8xf32>
    %24 = arith.mulf %22, %23 : vector<4x8xf32>
    %25 = arith.addf %19, %24 : vector<4x8xf32>
    %26 = vector.extract_strided_slice %0 {offsets = [0, 4], sizes = [4, 1], strides = [1, 1]} : vector<4x9xf32> to vector<4x1xf32>
    %c4 = arith.constant 4 : index
    %c0_6 = arith.constant 0 : index
    %27 = vector.load %arg3[%c4, %c0_6] : memref<9x8xf32, #tpu.memory_space<vmem>>, vector<1x8xf32>
    %28 = vector.broadcast %26 : vector<4x1xf32> to vector<4x8xf32>
    %29 = vector.broadcast %27 : vector<1x8xf32> to vector<4x8xf32>
    %30 = arith.mulf %28, %29 : vector<4x8xf32>
    %31 = arith.addf %25, %30 : vector<4x8xf32>
    %32 = vector.extract_strided_slice %0 {offsets = [0, 5], sizes = [4, 1], strides = [1, 1]} : vector<4x9xf32> to vector<4x1xf32>
    %c5 = arith.constant 5 : index
    %c0_7 = arith.constant 0 : index
    %33 = vector.load %arg3[%c5, %c0_7] : memref<9x8xf32, #tpu.memory_space<vmem>>, vector<1x8xf32>
    %34 = vector.broadcast %32 : vector<4x1xf32> to vector<4x8xf32>
    %35 = vector.broadcast %33 : vector<1x8xf32> to vector<4x8xf32>
    %36 = arith.mulf %34, %35 : vector<4x8xf32>
    %37 = arith.addf %31, %36 : vector<4x8xf32>
    %38 = vector.extract_strided_slice %0 {offsets = [0, 6], sizes = [4, 1], strides = [1, 1]} : vector<4x9xf32> to vector<4x1xf32>
    %c6 = arith.constant 6 : index
    %c0_8 = arith.constant 0 : index
    %39 = vector.load %arg3[%c6, %c0_8] : memref<9x8xf32, #tpu.memory_space<vmem>>, vector<1x8xf32>
    %40 = vector.broadcast %38 : vector<4x1xf32> to vector<4x8xf32>
    %41 = vector.broadcast %39 : vector<1x8xf32> to vector<4x8xf32>
    %42 = arith.mulf %40, %41 : vector<4x8xf32>
    %43 = arith.addf %37, %42 : vector<4x8xf32>
    %44 = vector.extract_strided_slice %0 {offsets = [0, 7], sizes = [4, 1], strides = [1, 1]} : vector<4x9xf32> to vector<4x1xf32>
    %c7 = arith.constant 7 : index
    %c0_9 = arith.constant 0 : index
    %45 = vector.load %arg3[%c7, %c0_9] : memref<9x8xf32, #tpu.memory_space<vmem>>, vector<1x8xf32>
    %46 = vector.broadcast %44 : vector<4x1xf32> to vector<4x8xf32>
    %47 = vector.broadcast %45 : vector<1x8xf32> to vector<4x8xf32>
    %48 = arith.mulf %46, %47 : vector<4x8xf32>
    %49 = arith.addf %43, %48 : vector<4x8xf32>
    %50 = vector.extract_strided_slice %0 {offsets = [0, 8], sizes = [4, 1], strides = [1, 1]} : vector<4x9xf32> to vector<4x1xf32>
    %c8 = arith.constant 8 : index
    %c0_10 = arith.constant 0 : index
    %51 = vector.load %arg3[%c8, %c0_10] : memref<9x8xf32, #tpu.memory_space<vmem>>, vector<1x8xf32>
    %52 = vector.broadcast %50 : vector<4x1xf32> to vector<4x8xf32>
    %53 = vector.broadcast %51 : vector<1x8xf32> to vector<4x8xf32>
    %54 = arith.mulf %52, %53 : vector<4x8xf32>
    %55 = arith.addf %49, %54 : vector<4x8xf32>
    %c0_11 = arith.constant 0 : index
    %c0_12 = arith.constant 0 : index
    %56 = vector.load %arg2[%c0_11, %c0_12] : memref<4x1xf32, #tpu.memory_space<vmem>>, vector<4x1xf32>
    %57 = vector.broadcast %56 : vector<4x1xf32> to vector<4x8xf32>
    %58 = arith.addf %55, %57 : vector<4x8xf32>
    %c0_13 = arith.constant 0 : index
    %c0_14 = arith.constant 0 : index
    %59 = vector.load %arg4[%c0_13, %c0_14] : memref<4x8xf32, #tpu.memory_space<vmem>>, vector<4x8xf32>
    tpu.vector_store %arg4[%c0_13, %c0_14], %58 {strides = array<i32>} : memref<4x8xf32, #tpu.memory_space<vmem>>, vector<4x8xf32>,
    return
  }
  func.func @transform_0(%arg0: i32) -> (i32, i32) {
    %c0_i32 = arith.constant 0 : i32
    %c0_i32_0 = arith.constant 0 : i32
    %c0_i32_1 = arith.constant 0 : i32
    return %c0_i32, %c0_i32_0 : i32, i32
  }
  func.func @transform_1(%arg0: i32) -> (i32, i32) {
    %c0_i32 = arith.constant 0 : i32
    %c0_i32_0 = arith.constant 0 : i32
    %c0_i32_1 = arith.constant 0 : i32
    return %c0_i32, %c0_i32_0 : i32, i32
  }
  func.func @transform_2(%arg0: i32) -> (i32, i32) {
    %c0_i32 = arith.constant 0 : i32
    %c0_i32_0 = arith.constant 0 : i32
    return %c0_i32, %arg0 : i32, i32
  }
  func.func @transform_3(%arg0: i32) -> (i32, i32) {
    %c0_i32 = arith.constant 0 : i32
    %c0_i32_0 = arith.constant 0 : i32
    return %c0_i32, %arg0 : i32, i32
  }
}

</mosaic_0001>

<llo_original>
// kernel: tpu_custom_call.1
$region0: #{tpu_custom_call.1}
  #allocation0 [shape = 'u32[]', space=smem, size = 0x4, offset = 0x4, fixed_abs, tag = 'smem constant byte address 0x4 - core index']
  #allocation1 [shape = 'u32[144,128]{1,0:T(1,128)}', space=vmem, size = 0x12000, scoped, tag = 'internal scratch']
  %s0 = inlined_call_operand.vmem [shape: f32[4,9], index: 0, kind: input, shape index: {}]
  %s1 = inlined_call_operand.vmem [shape: f32[4,1], index: 1, kind: input, shape index: {}]
  %s2 = inlined_call_operand.vmem [shape: f32[9,8], index: 2, kind: input, shape index: {}]
  %s3 = inlined_call_operand.hbm [shape: f32[4,8], index: 3, kind: output, shape index: {}]
  %s4 = sld [smem:[#allocation0]]
  $region22: #{tpu_custom_call.1} parent=0
    _
  %s6 = ssub.s32 1, %s4
  %s7 = scalar_select 0, %s6, %s4
  $region1: #{tpu_custom_call.1} parent=0
    #allocation2 [shape = 'u8[2048]{0}', space=vmem, size = 0x800, scoped, tag = 'output window, operand 0, single buffered']
    #allocation3 [shape = 's32[1]{0}', space=sflag, size = 0x4, scoped, tag = 'scoped memory for tpu_custom_call.1']
    %8 = vsyncpa [#allocation3], 0
    // Predicated region
    $region2: #{tpu_custom_call.1} parent=1 // pred_check
      _
    $region3: #{tpu_custom_call.1} parent=1 // pred_check_branch
      %10 = sbr.rel (0) target = $region5
    $region4: #{tpu_custom_call.1} parent=1 // pred_region
      _
    $region5: #{tpu_custom_call.1} parent=1 // pred_fallthru
      _
    // Predicated region
    $region6: #{tpu_custom_call.1} parent=1 // pred_check
      _
    $region7: #{tpu_custom_call.1} parent=1 // pred_check_branch
      %12 = sbr.rel (0) target = $region9
    $region8: #{tpu_custom_call.1} parent=1 // pred_region
      _
    $region9: #{tpu_custom_call.1} parent=1 // pred_fallthru
      _
    // Predicated region
    $region10: #{tpu_custom_call.1} parent=1 // pred_check
      _
    $region11: #{tpu_custom_call.1} parent=1 // pred_check_branch
      %14 = sbr.rel (0) target = $region13
    $region12: #{tpu_custom_call.1} parent=1 // pred_region
      _
    $region13: #{tpu_custom_call.1} parent=1 // pred_fallthru
      _
    %v15 = vld [vmem:[%s0] sm:$0xf]
    %v16 = vld [vmem:[%s2] sm:$0x1]
    %18 = vset.pattern.permute.xlu0 0
    %19 = vperm.xlu0 %18, %v15
    %v20 = vpop.permute.xlu0 %19
    %v22 = vlaneseq
    %v23 = vshrl.u32 %v22, 7
    %v24 = vsub.s32 0, %v23
    %v25 = vrot.slane %v16, %v24
    %v26 = vmul.f32 %v20, %v25
    %v27 = vadd.f32 %v26, 0.0
    %v28 = vld [vmem:[%s2 + $0x1] sm:$0x1]
    %29 = vset.pattern.permute.xlu0 1
    %30 = vperm.xlu0 %29, %v15
    %v31 = vpop.permute.xlu0 %30
    %v33 = vlaneseq
    %v34 = vshrl.u32 %v33, 7
    %v35 = vsub.s32 0, %v34
    %v36 = vrot.slane %v28, %v35
    %v37 = vmul.f32 %v31, %v36
    %v38 = vadd.f32 %v27, %v37
    %v39 = vld [vmem:[%s2 + $0x2] sm:$0x1]
    %40 = vset.pattern.permute.xlu0 2
    %41 = vperm.xlu0 %40, %v15
    %v42 = vpop.permute.xlu0 %41
    %v44 = vlaneseq
    %v45 = vshrl.u32 %v44, 7
    %v46 = vsub.s32 0, %v45
    %v47 = vrot.slane %v39, %v46
    %v48 = vmul.f32 %v42, %v47
    %v49 = vadd.f32 %v38, %v48
    %v50 = vld [vmem:[%s2 + $0x3] sm:$0x1]
    %51 = vset.pattern.permute.xlu0 3
    %52 = vperm.xlu0 %51, %v15
    %v53 = vpop.permute.xlu0 %52
    %v55 = vlaneseq
    %v56 = vshrl.u32 %v55, 7
    %v57 = vsub.s32 0, %v56
    %v58 = vrot.slane %v50, %v57
    %v59 = vmul.f32 %v53, %v58
    %v60 = vadd.f32 %v49, %v59
    %v61 = vld [vmem:[%s2 + $0x4] sm:$0x1]
    %62 = vset.pattern.permute.xlu0 4
    %63 = vperm.xlu0 %62, %v15
    %v64 = vpop.permute.xlu0 %63
    %v66 = vlaneseq
    %v67 = vshrl.u32 %v66, 7
    %v68 = vsub.s32 0, %v67
    %v69 = vrot.slane %v61, %v68
    %v70 = vmul.f32 %v64, %v69
    %v71 = vadd.f32 %v60, %v70
    %v72 = vld [vmem:[%s2 + $0x5] sm:$0x1]
    %73 = vset.pattern.permute.xlu0 5
    %74 = vperm.xlu0 %73, %v15
    %v75 = vpop.permute.xlu0 %74
    %v77 = vlaneseq
    %v78 = vshrl.u32 %v77, 7
    %v79 = vsub.s32 0, %v78
    %v80 = vrot.slane %v72, %v79
    %v81 = vmul.f32 %v75, %v80
    %v82 = vadd.f32 %v71, %v81
    %v83 = vld [vmem:[%s2 + $0x6] sm:$0x1]
    %84 = vset.pattern.permute.xlu0 6
    %85 = vperm.xlu0 %84, %v15
    %v86 = vpop.permute.xlu0 %85
    %v88 = vlaneseq
    %v89 = vshrl.u32 %v88, 7
    %v90 = vsub.s32 0, %v89
    %v91 = vrot.slane %v83, %v90
    %v92 = vmul.f32 %v86, %v91
    %v93 = vadd.f32 %v82, %v92
    %v94 = vld [vmem:[%s2 + $0x7] sm:$0x1]
    %95 = vset.pattern.permute.xlu0 7
    %96 = vperm.xlu0 %95, %v15
    %v97 = vpop.permute.xlu0 %96
    %v99 = vlaneseq
    %v100 = vshrl.u32 %v99, 7
    %v101 = vsub.s32 0, %v100
    %v102 = vrot.slane %v94, %v101
    %v103 = vmul.f32 %v97, %v102
    %v104 = vadd.f32 %v93, %v103
    %v105 = vld [vmem:[%s2 + $0x8] sm:$0x1]
    %106 = vset.pattern.permute.xlu0 8
    %107 = vperm.xlu0 %106, %v15
    %v108 = vpop.permute.xlu0 %107
    %v110 = vlaneseq
    %v111 = vshrl.u32 %v110, 7
    %v112 = vsub.s32 0, %v111
    %v113 = vrot.slane %v105, %v112
    %v114 = vmul.f32 %v108, %v113
    %v115 = vadd.f32 %v104, %v114
    %v116 = vld [vmem:[%s1] sm:$0xf]
    %118 = vset.pattern.permute.xlu0 0
    %119 = vperm.xlu0 %118, %v116
    %v120 = vpop.permute.xlu0 %119
    %v122 = vadd.f32 %v115, %v120
    %vm123 = vcmask 60416
    %124 = vst.msk [vmem:[#allocation2] sm:$0xf] %vm123, %v122
    // Predicated region
    $region14: #{tpu_custom_call.1} parent=1 // pred_check
      _
    $region15: #{tpu_custom_call.1} parent=1 // pred_check_branch
      %126 = sbr.rel (0) target = $region17
    $region16: #{tpu_custom_call.1} parent=1 // pred_region
      %s128 = ssub.s32 64, 64
      %129 = vsyncadd [#allocation3], %s128
      %s131 = sshll.u32 [#allocation2], 4
      %s132 = int_to_ptr.vmem [resolvable:$true] %s131
      %134 = dma.vmem_to_hbm [thread:$0]  %s132, 64, %s3, [#allocation3]
    $region17: #{tpu_custom_call.1} parent=1 // pred_fallthru
      _
    // Predicated region
    $region18: #{tpu_custom_call.1} parent=1 // pred_check
      _
    $region19: #{tpu_custom_call.1} parent=1 // pred_check_branch
      %136 = sbr.rel (0) target = $region21
    $region20: #{tpu_custom_call.1} parent=1 // pred_region
      %137 = dma.done [#allocation3], 64
    $region21: #{tpu_custom_call.1} parent=1 // pred_fallthru
      _
    %138 = vsyncpa [#allocation3], 1

</llo_original>
